<compile_context>
chip_gen: v7x
topology: tpu7x:2x2x1
jax: 0.10.0
libtpu: 0.0.40
codegen_flags: <defaults>
</compile_context>

<pallas_src>
import jax
import jax.numpy as jnp
from jax.experimental import pallas as pl
from jax.experimental.pallas import tpu as pltpu

HIDDEN = 64
NUM_LAYERS = 5


def mlp_kernel(x_ref, w_ref, b_ref, o_ref):
    # x_ref: (tb, in_dim) f32
    # w_ref: (5, 64, 64) bf16 (resident, constant block across the grid)
    # b_ref: (5, 64)     f32  (resident)
    # o_ref: (tb, 64)    f32  (cols >= out_dim are exactly zero by construction)
    in_dim = x_ref.shape[1]

    # fc1 + ReLU (contract only over the true input width; W1 rows beyond in_dim are 0).
    h = jnp.dot(x_ref[...].astype(jnp.bfloat16), w_ref[0, :in_dim, :],
                preferred_element_type=jnp.float32) + b_ref[0]
    h = jnp.maximum(h, 0.0)

    # hidden1 / hidden / hidden2 + ReLU
    for k in (1, 2, 3):
        h = jnp.dot(h.astype(jnp.bfloat16), w_ref[k],
                    preferred_element_type=jnp.float32) + b_ref[k]
        h = jnp.maximum(h, 0.0)

    # fc2 (no activation); padded output columns stay zero (zero weights & bias).
    o_ref[...] = (jnp.dot(h.astype(jnp.bfloat16), w_ref[4],
                          preferred_element_type=jnp.float32) + b_ref[4]
                  ).astype(o_ref.dtype)


def _choose_batch_tile(B, *, max_tile=1024):
    """Largest multiple-of-8 divisor of B that is <= max_tile and keeps >= 2 grid steps."""
    if B % 8 != 0:
        return B  # block dim == full array dim is always legal
    best = 8
    t = 8
    limit = min(B // 2, max_tile)
    while t <= limit:
        if B % t == 0:
            best = t
        t += 8
    if B // best == 1 and B <= max_tile:
        return B
    return best


def pack_params(params, hidden=HIDDEN):
    """Pack 5 (W, b) pairs into a zero-padded (5, H, H) bf16 array + (5, H) f32 biases."""
    n = len(params)
    w_packed = jnp.zeros((n, hidden, hidden), jnp.float32)
    b_packed = jnp.zeros((n, hidden), jnp.float32)
    for k, (w, b) in enumerate(params):
        w_packed = w_packed.at[k, :w.shape[0], :w.shape[1]].set(w)
        b_packed = b_packed.at[k, :b.shape[0]].set(b)
    return w_packed.astype(jnp.bfloat16), b_packed


def neural_net_forward(x, params, *, batch_tile=None):
    """x: (B, input_dim) f32. params: list of (W, b) with W as (in, out)."""
    B, in_dim = x.shape
    hidden = params[0][0].shape[1]
    out_dim = params[-1][0].shape[1]
    assert in_dim <= hidden and out_dim <= hidden

    w_packed, b_packed = pack_params(params, hidden)

    tb = _choose_batch_tile(B) if batch_tile is None else batch_tile
    assert B % tb == 0, "batch must be divisible by batch_tile"

    flops = 2 * B * (in_dim * hidden + 4 * hidden * hidden)
    bytes_accessed = (B * in_dim * 4 + B * hidden * 4
                      + w_packed.size * 2 + b_packed.size * 4)

    out = pl.pallas_call(
        mlp_kernel,
        out_shape=jax.ShapeDtypeStruct((B, hidden), jnp.float32),
        grid_spec=pltpu.PrefetchScalarGridSpec(
            num_scalar_prefetch=0,
            grid=(B // tb,),
            in_specs=[
                pl.BlockSpec((tb, in_dim), lambda i: (i, 0)),
                pl.BlockSpec(w_packed.shape, lambda i: (0, 0, 0)),  # constant block
                pl.BlockSpec(b_packed.shape, lambda i: (0, 0)),     # constant block
            ],
            out_specs=pl.BlockSpec((tb, hidden), lambda i: (i, 0)),
        ),
        compiler_params=pltpu.CompilerParams(
            dimension_semantics=("parallel",)),
        cost_estimate=pl.CostEstimate(flops=flops, transcendentals=0,
                                      bytes_accessed=bytes_accessed),
    )(x, w_packed, b_packed)

    return out[:, :out_dim]


def init_linear(key, fan_in, fan_out):
    # Mimics PyTorch nn.Linear default init: U(-1/sqrt(fan_in), 1/sqrt(fan_in)).
    kw, kb = jax.random.split(key)
    bound = 1.0 / jnp.sqrt(fan_in)
    w = jax.random.uniform(kw, (fan_in, fan_out), jnp.float32, -bound, bound)
    b = jax.random.uniform(kb, (fan_out,), jnp.float32, -bound, bound)
    return w, b


def reference_forward(x, params):
    h = x
    for i, (w, b) in enumerate(params):
        h = h @ w + b
        if i < len(params) - 1:
            h = jnp.maximum(h, 0.0)
    return h


if __name__ == "__main__":
    input_dim, hidden, output_dim = 32, HIDDEN, 8
    batch = 64  # small, but yields a 2-step "parallel" grid (tb = 32)

    key = jax.random.PRNGKey(0)
    k_x, k1, k2, k3, k4, k5 = jax.random.split(key, 6)

    x = jax.random.normal(k_x, (batch, input_dim), jnp.float32)

    params = [
        init_linear(k1, input_dim, hidden),   # fc1
        init_linear(k2, hidden, hidden),      # hidden1
        init_linear(k3, hidden, hidden),      # hidden
        init_linear(k4, hidden, hidden),      # hidden2
        init_linear(k5, hidden, output_dim),  # fc2
    ]

    out = neural_net_forward(x, params)
    out = jax.block_until_ready(out)

    ref = reference_forward(x, params)
    assert out.shape == (batch, output_dim)
    # Tolerance accounts for bf16 MXU operands (f32 accumulation).
    assert jnp.allclose(out, ref, atol=5e-2, rtol=5e-2), "mismatch vs reference"

    print("KERNEL_OK")
</pallas_src>

<mosaic_0001>
module attributes {stable_mosaic.version = 11 : i64} {
  func.func @mlp_kernel(%arg0: i32, %arg1: memref<32x32xf32, #tpu.memory_space<vmem>>, %arg2: memref<5x64x64xbf16, #tpu.memory_space<vmem>>, %arg3: memref<5x64xf32, #tpu.memory_space<vmem>>, %arg4: memref<32x64xf32, #tpu.memory_space<vmem>>) attributes {dimension_semantics = [#tpu.dimension_semantics<parallel>], iteration_bounds = array<i64: 2>, scalar_prefetch = 0 : i64, scratch_operands = 0 : i64, tpu.core_type = #tpu.core_type<tc>, window_params = [{transform_indices = @transform_0, window_bounds = array<i64: 32, 32>}, {pipeline_mode = #tpu.pipeline_mode<synchronous>, transform_indices = @transform_1, window_bounds = array<i64: 5, 64, 64>}, {pipeline_mode = #tpu.pipeline_mode<synchronous>, transform_indices = @transform_2, window_bounds = array<i64: 5, 64>}, {transform_indices = @transform_3, window_bounds = array<i64: 32, 64>}]} {
    %c0 = arith.constant 0 : index
    %c0_0 = arith.constant 0 : index
    %0 = vector.load %arg1[%c0, %c0_0] : memref<32x32xf32, #tpu.memory_space<vmem>>, vector<32x32xf32>
    %1 = arith.truncf %0 : vector<32x32xf32> to vector<32x32xbf16>
    %c0_1 = arith.constant 0 : index
    %c0_2 = arith.constant 0 : index
    %c0_3 = arith.constant 0 : index
    %2 = vector.load %arg2[%c0_1, %c0_2, %c0_3] : memref<5x64x64xbf16, #tpu.memory_space<vmem>>, vector<1x32x64xbf16>
    %3 = vector.shape_cast %2 : vector<1x32x64xbf16> to vector<32x64xbf16>
    %cst = arith.constant dense<0.000000e+00> : vector<32x64xf32>
    %4 = tpu.matmul %1, %3, %cst {dimension_numbers = #tpu.dot_dimension_numbers<[1], [0], [0], [1], [0, 0, 1, 1], [], []>} : vector<32x32xbf16>, vector<32x64xbf16>, vector<32x64xf32> -> vector<32x64xf32>
    %c0_4 = arith.constant 0 : index
    %c0_5 = arith.constant 0 : index
    %5 = vector.load %arg3[%c0_4, %c0_5] : memref<5x64xf32, #tpu.memory_space<vmem>>, vector<1x64xf32>
    %6 = vector.shape_cast %5 : vector<1x64xf32> to vector<64xf32>
    %7 = vector.shape_cast %6 : vector<64xf32> to vector<1x64xf32>
    %8 = vector.broadcast %7 : vector<1x64xf32> to vector<32x64xf32>
    %9 = arith.addf %4, %8 : vector<32x64xf32>
    %cst_6 = arith.constant 0.000000e+00 : f32
    %10 = vector.broadcast %cst_6 : f32 to vector<32x64xf32>
    %11 = arith.maximumf %9, %10 : vector<32x64xf32>
    %12 = arith.truncf %11 : vector<32x64xf32> to vector<32x64xbf16>
    %c1 = arith.constant 1 : index
    %c0_7 = arith.constant 0 : index
    %c0_8 = arith.constant 0 : index
    %13 = vector.load %arg2[%c1, %c0_7, %c0_8] : memref<5x64x64xbf16, #tpu.memory_space<vmem>>, vector<1x64x64xbf16>
    %14 = vector.shape_cast %13 : vector<1x64x64xbf16> to vector<64x64xbf16>
    %cst_9 = arith.constant dense<0.000000e+00> : vector<32x64xf32>
    %15 = tpu.matmul %12, %14, %cst_9 {dimension_numbers = #tpu.dot_dimension_numbers<[1], [0], [0], [1], [0, 0, 1, 1], [], []>} : vector<32x64xbf16>, vector<64x64xbf16>, vector<32x64xf32> -> vector<32x64xf32>
    %c1_10 = arith.constant 1 : index
    %c0_11 = arith.constant 0 : index
    %16 = vector.load %arg3[%c1_10, %c0_11] : memref<5x64xf32, #tpu.memory_space<vmem>>, vector<1x64xf32>
    %17 = vector.shape_cast %16 : vector<1x64xf32> to vector<64xf32>
    %18 = vector.shape_cast %17 : vector<64xf32> to vector<1x64xf32>
    %19 = vector.broadcast %18 : vector<1x64xf32> to vector<32x64xf32>
    %20 = arith.addf %15, %19 : vector<32x64xf32>
    %cst_12 = arith.constant 0.000000e+00 : f32
    %21 = vector.broadcast %cst_12 : f32 to vector<32x64xf32>
    %22 = arith.maximumf %20, %21 : vector<32x64xf32>
    %23 = arith.truncf %22 : vector<32x64xf32> to vector<32x64xbf16>
    %c2 = arith.constant 2 : index
    %c0_13 = arith.constant 0 : index
    %c0_14 = arith.constant 0 : index
    %24 = vector.load %arg2[%c2, %c0_13, %c0_14] : memref<5x64x64xbf16, #tpu.memory_space<vmem>>, vector<1x64x64xbf16>
    %25 = vector.shape_cast %24 : vector<1x64x64xbf16> to vector<64x64xbf16>
    %cst_15 = arith.constant dense<0.000000e+00> : vector<32x64xf32>
    %26 = tpu.matmul %23, %25, %cst_15 {dimension_numbers = #tpu.dot_dimension_numbers<[1], [0], [0], [1], [0, 0, 1, 1], [], []>} : vector<32x64xbf16>, vector<64x64xbf16>, vector<32x64xf32> -> vector<32x64xf32>
    %c2_16 = arith.constant 2 : index
    %c0_17 = arith.constant 0 : index
    %27 = vector.load %arg3[%c2_16, %c0_17] : memref<5x64xf32, #tpu.memory_space<vmem>>, vector<1x64xf32>
    %28 = vector.shape_cast %27 : vector<1x64xf32> to vector<64xf32>
    %29 = vector.shape_cast %28 : vector<64xf32> to vector<1x64xf32>
    %30 = vector.broadcast %29 : vector<1x64xf32> to vector<32x64xf32>
    %31 = arith.addf %26, %30 : vector<32x64xf32>
    %cst_18 = arith.constant 0.000000e+00 : f32
    %32 = vector.broadcast %cst_18 : f32 to vector<32x64xf32>
    %33 = arith.maximumf %31, %32 : vector<32x64xf32>
    %34 = arith.truncf %33 : vector<32x64xf32> to vector<32x64xbf16>
    %c3 = arith.constant 3 : index
    %c0_19 = arith.constant 0 : index
    %c0_20 = arith.constant 0 : index
    %35 = vector.load %arg2[%c3, %c0_19, %c0_20] : memref<5x64x64xbf16, #tpu.memory_space<vmem>>, vector<1x64x64xbf16>
    %36 = vector.shape_cast %35 : vector<1x64x64xbf16> to vector<64x64xbf16>
    %cst_21 = arith.constant dense<0.000000e+00> : vector<32x64xf32>
    %37 = tpu.matmul %34, %36, %cst_21 {dimension_numbers = #tpu.dot_dimension_numbers<[1], [0], [0], [1], [0, 0, 1, 1], [], []>} : vector<32x64xbf16>, vector<64x64xbf16>, vector<32x64xf32> -> vector<32x64xf32>
    %c3_22 = arith.constant 3 : index
    %c0_23 = arith.constant 0 : index
    %38 = vector.load %arg3[%c3_22, %c0_23] : memref<5x64xf32, #tpu.memory_space<vmem>>, vector<1x64xf32>
    %39 = vector.shape_cast %38 : vector<1x64xf32> to vector<64xf32>
    %40 = vector.shape_cast %39 : vector<64xf32> to vector<1x64xf32>
    %41 = vector.broadcast %40 : vector<1x64xf32> to vector<32x64xf32>
    %42 = arith.addf %37, %41 : vector<32x64xf32>
    %cst_24 = arith.constant 0.000000e+00 : f32
    %43 = vector.broadcast %cst_24 : f32 to vector<32x64xf32>
    %44 = arith.maximumf %42, %43 : vector<32x64xf32>
    %45 = arith.truncf %44 : vector<32x64xf32> to vector<32x64xbf16>
    %c4 = arith.constant 4 : index
    %c0_25 = arith.constant 0 : index
    %c0_26 = arith.constant 0 : index
    %46 = vector.load %arg2[%c4, %c0_25, %c0_26] : memref<5x64x64xbf16, #tpu.memory_space<vmem>>, vector<1x64x64xbf16>
    %47 = vector.shape_cast %46 : vector<1x64x64xbf16> to vector<64x64xbf16>
    %cst_27 = arith.constant dense<0.000000e+00> : vector<32x64xf32>
    %48 = tpu.matmul %45, %47, %cst_27 {dimension_numbers = #tpu.dot_dimension_numbers<[1], [0], [0], [1], [0, 0, 1, 1], [], []>} : vector<32x64xbf16>, vector<64x64xbf16>, vector<32x64xf32> -> vector<32x64xf32>
    %c4_28 = arith.constant 4 : index
    %c0_29 = arith.constant 0 : index
    %49 = vector.load %arg3[%c4_28, %c0_29] : memref<5x64xf32, #tpu.memory_space<vmem>>, vector<1x64xf32>
    %50 = vector.shape_cast %49 : vector<1x64xf32> to vector<64xf32>
    %51 = vector.shape_cast %50 : vector<64xf32> to vector<1x64xf32>
    %52 = vector.broadcast %51 : vector<1x64xf32> to vector<32x64xf32>
    %53 = arith.addf %48, %52 : vector<32x64xf32>
    %c0_30 = arith.constant 0 : index
    %c0_31 = arith.constant 0 : index
    %54 = vector.load %arg4[%c0_30, %c0_31] : memref<32x64xf32, #tpu.memory_space<vmem>>, vector<32x64xf32>
    tpu.vector_store %arg4[%c0_30, %c0_31], %53 {strides = array<i32>} : memref<32x64xf32, #tpu.memory_space<vmem>>, vector<32x64xf32>,
    return
  }
  func.func @transform_0(%arg0: i32) -> (i32, i32) {
    %c0_i32 = arith.constant 0 : i32
    %c0_i32_0 = arith.constant 0 : i32
    return %arg0, %c0_i32 : i32, i32
  }
  func.func @transform_1(%arg0: i32) -> (i32, i32, i32) {
    %c0_i32 = arith.constant 0 : i32
    %c0_i32_0 = arith.constant 0 : i32
    %c0_i32_1 = arith.constant 0 : i32
    %c0_i32_2 = arith.constant 0 : i32
    return %c0_i32, %c0_i32_0, %c0_i32_1 : i32, i32, i32
  }
  func.func @transform_2(%arg0: i32) -> (i32, i32) {
    %c0_i32 = arith.constant 0 : i32
    %c0_i32_0 = arith.constant 0 : i32
    %c0_i32_1 = arith.constant 0 : i32
    return %c0_i32, %c0_i32_0 : i32, i32
  }
  func.func @transform_3(%arg0: i32) -> (i32, i32) {
    %c0_i32 = arith.constant 0 : i32
    %c0_i32_0 = arith.constant 0 : i32
    return %arg0, %c0_i32 : i32, i32
  }
}

</mosaic_0001>

<llo_original>
// kernel: tpu_custom_call.1
$region0: #{tpu_custom_call.1}
  #allocation0 [shape = 'u32[]', space=smem, size = 0x4, offset = 0x4, fixed_abs, tag = 'smem constant byte address 0x4 - core index']
  #allocation1 [shape = 'u32[144,128]{1,0:T(1,128)}', space=vmem, size = 0x12000, scoped, tag = 'internal scratch']
  %s0 = inlined_call_operand.vmem [shape: f32[64,32], index: 0, kind: input, shape index: {}]
  %s1 = inlined_call_operand.hbm [shape: bf16[5,64,64], index: 1, kind: input, shape index: {}]
  %s2 = inlined_call_operand.vmem [shape: f32[5,64], index: 2, kind: input, shape index: {}]
  %s3 = inlined_call_operand.hbm [shape: f32[64,64], index: 3, kind: output, shape index: {}]
  %s4 = sld [smem:[#allocation0]]
  $region49: #{tpu_custom_call.1} parent=0
    _
  %s6 = ssub.s32 1, %s4
  %s7 = scalar_select 0, %s6, %s4
  $region1: #{tpu_custom_call.1} parent=0
    #allocation2 [shape = 'u8[81920]{0}', space=vmem, size = 0x14000, scoped, tag = 'input window, operand 1, single buffered']
    #allocation3 [shape = 's32[2]{0}', space=sflag, size = 0x8, scoped, tag = 'scoped memory for tpu_custom_call.1']
    #allocation4 [shape = 's32[2]{0}', space=sflag, size = 0x8, scoped, tag = 'scoped memory for tpu_custom_call.1']
    #allocation5 [shape = 'u8[32768]{0}', space=vmem, size = 0x8000, scoped, tag = 'output window, operand 0']
    %8 = vsyncpa [#allocation3], 0
    %9 = vsyncpa [#allocation4], 0
    %s10 = scalar_lea.sflag [#allocation4], 1
    %11 = vsyncpa %s10, 0
    loop: start=0, step=1, limit=4
    $region2: #{tpu_custom_call.1} parent=1 // loop_pre_header
      _
    $region3: #{tpu_custom_call.1} parent=1 // loop_header
      %s13 = sphi 0, %s17
      %p14 = scmp.ge.s32.totalorder %s13, 4
      %s23 = sphi 0, %s25
      %s26 = sphi 0, %s23
      %s27 = sphi 0, %s26
      %s43 = sphi 0, %s27
      %s47 = sphi 0, %s47
      %s49 = sphi 0, %s47
      %s50 = sphi 0, %s49
      %s64 = sphi 0, %s50
      %s68 = sphi 0, %s68
      %s70 = sphi 0, %s68
      %s71 = sphi 0, %s70
      %s85 = sphi 0, %s71
      %s91 = sphi 0, %s93
      %s94 = sphi 0, %s91
      %s95 = sphi 0, %s94
      %s111 = sphi 0, %s95
    $region4: #{tpu_custom_call.1} parent=1 // loop_header_branch
      %16 = sbr.rel (%p14) target = $region8
    $region5: #{tpu_custom_call.1} parent=1 // loop_body
      %s18 = ssub.s32 %s13, 1
      %s19 = ssub.s32 %s13, 2
      %s20 = sadd.s32 %s13, 1
      %s21 = ssub.s32 %s13, %s20
      %p22 = scmp.eq.s32.totalorder %s21, 0
      %s24 = sadd.s32 %s23, 1
      %s25 = scalar_select %p22, %s23, %s24
      %p28 = pneg %p22
      %p29 = scmp.eq.s32.totalorder %s13, 1
      %p30 = por %p28, %p29
      %p31 = scmp.ne.s32.totalorder %s23, %s26
      %p32 = scmp.eq.s32.totalorder %s13, 0
      %p33 = por %p31, %p32
      %p34 = scmp.ne.s32.totalorder %s23, %s26
      %p35 = scmp.eq.s32.totalorder %s18, 1
      %p36 = por %p34, %p35
      %p37 = scmp.ne.s32.totalorder %s26, %s27
      %p38 = scmp.eq.s32.totalorder %s18, 0
      %p39 = por %p37, %p38
      %p40 = scmp.ne.s32.totalorder %s26, %s27
      %p41 = scmp.eq.s32.totalorder %s19, 1
      %p42 = por %p40, %p41
      %p44 = scmp.ne.s32.totalorder %s27, %s43
      %p45 = scmp.eq.s32.totalorder %s19, 0
      %p46 = por %p44, %p45
      %s48 = sadd.s32 %s47, 1
      %p51 = scmp.eq.s32.totalorder %s13, 1
      %p52 = scmp.ne.s32.totalorder %s47, %s49
      %p53 = scmp.eq.s32.totalorder %s13, 0
      %p54 = por %p52, %p53
      %p55 = scmp.ne.s32.totalorder %s47, %s49
      %p56 = scmp.eq.s32.totalorder %s18, 1
      %p57 = por %p55, %p56
      %p58 = scmp.ne.s32.totalorder %s49, %s50
      %p59 = scmp.eq.s32.totalorder %s18, 0
      %p60 = por %p58, %p59
      %p61 = scmp.ne.s32.totalorder %s49, %s50
      %p62 = scmp.eq.s32.totalorder %s19, 1
      %p63 = por %p61, %p62
      %p65 = scmp.ne.s32.totalorder %s50, %s64
      %p66 = scmp.eq.s32.totalorder %s19, 0
      %p67 = por %p65, %p66
      %s69 = sadd.s32 %s68, 1
      %p72 = scmp.eq.s32.totalorder %s13, 1
      %p73 = scmp.ne.s32.totalorder %s68, %s70
      %p74 = scmp.eq.s32.totalorder %s13, 0
      %p75 = por %p73, %p74
      %p76 = scmp.ne.s32.totalorder %s68, %s70
      %p77 = scmp.eq.s32.totalorder %s18, 1
      %p78 = por %p76, %p77
      %p79 = scmp.ne.s32.totalorder %s70, %s71
      %p80 = scmp.eq.s32.totalorder %s18, 0
      %p81 = por %p79, %p80
      %p82 = scmp.ne.s32.totalorder %s70, %s71
      %p83 = scmp.eq.s32.totalorder %s19, 1
      %p84 = por %p82, %p83
      %p86 = scmp.ne.s32.totalorder %s71, %s85
      %p87 = scmp.eq.s32.totalorder %s19, 0
      %p88 = por %p86, %p87
      %s89 = ssub.s32 %s13, %s20
      %p90 = scmp.eq.s32.totalorder %s89, 0
      %s92 = sadd.s32 %s91, 1
      %s93 = scalar_select %p90, %s91, %s92
      %p96 = pneg %p90
      %p97 = scmp.eq.s32.totalorder %s13, 1
      %p98 = por %p96, %p97
      %p99 = scmp.ne.s32.totalorder %s91, %s94
      %p100 = scmp.eq.s32.totalorder %s13, 0
      %p101 = por %p99, %p100
      %p102 = scmp.ne.s32.totalorder %s91, %s94
      %p103 = scmp.eq.s32.totalorder %s18, 1
      %p104 = por %p102, %p103
      %p105 = scmp.ne.s32.totalorder %s94, %s95
      %p106 = scmp.eq.s32.totalorder %s18, 0
      %p107 = por %p105, %p106
      %p108 = scmp.ne.s32.totalorder %s94, %s95
      %p109 = scmp.eq.s32.totalorder %s19, 1
      %p110 = por %p108, %p109
      %p112 = scmp.ne.s32.totalorder %s95, %s111
      %p113 = scmp.eq.s32.totalorder %s19, 0
      %p114 = por %p112, %p113
      %p115 = scmp.le.s32.totalorder 1, %s13
      %p116 = scmp.lt.s32.totalorder %s13, 3
      %p117 = pnand %p115, %p116
      %p118 = pneg %p117
      // Predicated region
      $region9: #{tpu_custom_call.1} parent=5 // pred_check
        _
      $region10: #{tpu_custom_call.1} parent=5 // pred_check_branch
        %120 = sbr.rel (%p117) target = $region12
      $region11: #{tpu_custom_call.1} parent=5 // pred_region
        %s121 = ssub.s32 %s13, 1
        // Predicated region
        $region13: #{tpu_custom_call.1} parent=11 // pred_check
          %p122 = pneg %p60
        $region14: #{tpu_custom_call.1} parent=11 // pred_check_branch
          %124 = sbr.rel (%p122) target = $region16
        $region15: #{tpu_custom_call.1} parent=11 // pred_region
          %s126 = ssub.s32 2560, 2560
          %127 = vsyncadd [#allocation3], %s126
          %s128 = sshll.u32 [#allocation2], 4
          %s129 = int_to_ptr.vmem [resolvable:$true] %s128
          %134 = dma.hbm_to_vmem [thread:$0]  %s1, 2560, %s129, [#allocation3], 64, 64, 4
        $region16: #{tpu_custom_call.1} parent=11 // pred_fallthru
          _
        // Predicated region
        $region17: #{tpu_custom_call.1} parent=11 // pred_check
          %p135 = pneg %p81
        $region18: #{tpu_custom_call.1} parent=11 // pred_check_branch
          %137 = sbr.rel (%p135) target = $region20
        $region19: #{tpu_custom_call.1} parent=11 // pred_region
          _
        $region20: #{tpu_custom_call.1} parent=11 // pred_fallthru
          _
      $region12: #{tpu_custom_call.1} parent=5 // pred_fallthru
        _
      %p138 = scmp.lt.s32.totalorder %s13, 2
      // Predicated region
      $region21: #{tpu_custom_call.1} parent=5 // pred_check
        %p139 = pneg %p138
      $region22: #{tpu_custom_call.1} parent=5 // pred_check_branch
        %141 = sbr.rel (%p139) target = $region24
      $region23: #{tpu_custom_call.1} parent=5 // pred_region
        // Predicated region
        $region25: #{tpu_custom_call.1} parent=23 // pred_check
          %p142 = pneg %p33
        $region26: #{tpu_custom_call.1} parent=23 // pred_check_branch
          %144 = sbr.rel (%p142) target = $region28
        $region27: #{tpu_custom_call.1} parent=23 // pred_region
          %s145 = smul.u32 4, %s13
          %p146 = scmp.lt.s32.totalorder %s145, 7
          %s147 = scalar_select %p146, %s145, 7
          %s148 = smul.addr %s147, 8
          %s149 = scalar_lea.vmem %s0, %s148
          %s150 = smul.u32 4, %s13
        $region28: #{tpu_custom_call.1} parent=23 // pred_fallthru
          _
      $region24: #{tpu_custom_call.1} parent=5 // pred_fallthru
        _
      %p151 = scmp.le.s32.totalorder 1, %s13
      %p152 = scmp.lt.s32.totalorder %s13, 3
      %p153 = pnand %p151, %p152
      %p154 = pneg %p153
      // Predicated region
      $region29: #{tpu_custom_call.1} parent=5 // pred_check
        _
      $region30: #{tpu_custom_call.1} parent=5 // pred_check_branch
        %156 = sbr.rel (%p153) target = $region32
      $region31: #{tpu_custom_call.1} parent=5 // pred_region
        %s157 = ssub.s32 %s13, 1
        // Predicated region
        $region33: #{tpu_custom_call.1} parent=31 // pred_check
          %p158 = pneg %p60
        $region34: #{tpu_custom_call.1} parent=31 // pred_check_branch
          %160 = sbr.rel (%p158) target = $region36
        $region35: #{tpu_custom_call.1} parent=31 // pred_region
          %161 = dma.done [#allocation3], 2560
        $region36: #{tpu_custom_call.1} parent=31 // pred_fallthru
          _
        %s162 = smul.u32 4, %s18
        %p163 = scmp.lt.s32.totalorder %s162, 7
        %s164 = scalar_select %p163, %s162, 7
        %s165 = smul.addr %s164, 8
        %s166 = scalar_lea.vmem %s0, %s165
        %p167 = pneg %p39
        %p168 = pneg %p36
        %p169 = pneg %p60
        %p170 = pneg %p57
        %p171 = pneg %p81
        %p172 = pneg %p78
        %p173 = pneg %p107
        %p174 = pneg %p104
        %s175 = sand.u32 %s94, 1
        %s176 = scalar_lea.sflag [#allocation4], %s175
        %s177 = sand.u32 %s94, 1
        %s178 = smul.addr %s177, 32
        %s179 = scalar_lea.vmem [#allocation5], %s178
        %s180 = smul.u32 4, %s18
        %p181 = scmp.lt.s32.totalorder %s180, 7
        %s182 = scalar_select %p181, %s180, 7
        %s183 = smul.addr %s182, 8
        %s184 = scalar_lea.vmem %s0, %s183
        %s185 = smul.u32 4, %s18
        %s186 = smul.u32 4, %s18
        %v188 = vld [vmem:[%s184] sm:$0xff]
        %v189 = vld [vmem:[%s184 + $0x8] sm:$0xff]
        %v190 = vld [vmem:[%s184 + $0x10] sm:$0xff]
        %v191 = vld [vmem:[%s184 + $0x18] sm:$0xff]
        %v192 = vpack.c.bf16 %v189, %v188
        %v193 = vpack.c.bf16 %v191, %v190
        %v194 = vld [vmem:[#allocation2] sm:$0xf]
        %v195 = vld [vmem:[#allocation2 + $0x4] sm:$0xf]
        %v196 = vld [vmem:[#allocation2 + $0x8] sm:$0xf]
        %v197 = vld [vmem:[#allocation2 + $0xc] sm:$0xf]
        %v198 = vld [vmem:[%s2] sm:$0x1]
        %v199 = vlaneseq
        %v200 = vshrl.u32 %v199, 7
        %v201 = vsub.s32 0, %v200
        %v202 = vrot.slane %v198, %v201
        %v207 = vunpack.c.l.b16 %v194
        %v208 = vunpack.c.l.b16 %v195
        %v209 = vunpack.c.l.b16 %v196
        %v210 = vunpack.c.l.b16 %v197
        %v211 = vpack.c.b16 %v208, %v207
        %v212 = vpack.c.b16 %v210, %v209
        %vm215 = vcmask 261120
        %v217 = vsel %vm215, %v192, 0
        %v220 = vsel %vm215, %v193, 0
        %222 = vmatprep.subr.bf16.mxu0 0
        %223 = vmatpush1.bf16.msra.mxu0 %v211
        %224 = vmatprep.subr.bf16.mxu0 0
        %225 = vmatpush1.bf16.msra.mxu0 %v212
        %226 = vmatprep.subr.bf16.mxu0 0
        %227 = vmatpush1.bf16.msra.mxu0 0
        %228 = vmatprep.subr.bf16.mxu0 0
        %229 = vmatpush1.bf16.msra.mxu0 0
        %230 = vmatprep.subr.bf16.mxu0 0
        %231 = vmatpush1.bf16.msra.mxu0 0
        %232 = vmatprep.subr.bf16.mxu0 0
        %233 = vmatpush1.bf16.msra.mxu0 0
        %234 = vmatprep.subr.bf16.mxu0 0
        %235 = vmatpush1.bf16.msra.mxu0 0
        %236 = vmatprep.subr.bf16.mxu0 0
        %237 = vmatpush1.bf16.msra.mxu0 0
        %238 = vmatprep.subr.bf16.mxu0 0
        %239 = vmatpush1.bf16.msra.mxu0 0
        %240 = vmatprep.subr.bf16.mxu0 0
        %241 = vmatpush1.bf16.msra.mxu0 0
        %242 = vmatprep.subr.bf16.mxu0 0
        %243 = vmatpush1.bf16.msra.mxu0 0
        %244 = vmatprep.subr.bf16.mxu0 0
        %245 = vmatpush1.bf16.msra.mxu0 0
        %246 = vmatprep.subr.bf16.mxu0 0
        %247 = vmatpush1.bf16.msra.mxu0 0
        %248 = vmatprep.subr.bf16.mxu0 0
        %249 = vmatpush1.bf16.msra.mxu0 0
        %250 = vmatprep.subr.bf16.mxu0 0
        %251 = vmatpush1.bf16.msra.mxu0 0
        %252 = vmatprep.subr.bf16.mxu0 0
        %253 = vmatpush1.bf16.msra.mxu0 0
        %254 = vmatprep.mubr.bf16.mxu0 0
        %255 = vmatmul.mubr.bf16.gmra.mrb[0].mxu0 %v217
        %v256 = vpop.f32.mrb[0].mxu0
        %v257 = vadd.f32 %v202, %v256
        %v258 = vpop.f32.mrb[0].mxu0
        %v259 = vpop.f32.mrb[0].mxu0
        %v260 = vadd.f32 %v202, %v259
        %v261 = vpop.f32.mrb[0].mxu0
        %262 = vmatprep.mubr.bf16.mxu0 0
        %263 = vmatmul.mubr.bf16.gmra.mrb[0].mxu0 %v220
        %v264 = vpop.f32.mrb[0].mxu0
        %v265 = vadd.f32 %v202, %v264
        %v266 = vpop.f32.mrb[0].mxu0
        %v267 = vpop.f32.mrb[0].mxu0
        %v268 = vadd.f32 %v202, %v267
        %v269 = vpop.f32.mrb[0].mxu0
        %270 = vdwg.mxu0
        %v271 = vmax.f32 %v257, 0.0
        %v272 = vmax.f32 %v260, 0.0
        %v273 = vmax.f32 %v265, 0.0
        %v274 = vmax.f32 %v268, 0.0
        %v275 = vpack.c.bf16 %v272, %v271
        %v276 = vpack.c.bf16 %v274, %v273
        %s277 = scalar_lea.vmem [#allocation2], 32
        %v278 = vld [vmem:[%s277] sm:$0xf]
        %v279 = vld [vmem:[%s277 + $0x4] sm:$0xf]
        %v280 = vld [vmem:[%s277 + $0x8] sm:$0xf]
        %v281 = vld [vmem:[%s277 + $0xc] sm:$0xf]
        %v282 = vld [vmem:[%s277 + $0x10] sm:$0xf]
        %v283 = vld [vmem:[%s277 + $0x14] sm:$0xf]
        %v284 = vld [vmem:[%s277 + $0x18] sm:$0xf]
        %v285 = vld [vmem:[%s277 + $0x1c] sm:$0xf]
        %v286 = vld [vmem:[%s2 + $0x1] sm:$0x1]
        %v287 = vlaneseq
        %v288 = vshrl.u32 %v287, 7
        %v289 = vsub.s32 0, %v288
        %v290 = vrot.slane %v286, %v289
        %v299 = vunpack.c.l.b16 %v278
        %v300 = vunpack.c.l.b16 %v279
        %v301 = vunpack.c.l.b16 %v280
        %v302 = vunpack.c.l.b16 %v281
        %v303 = vunpack.c.l.b16 %v282
        %v304 = vunpack.c.l.b16 %v283
        %v305 = vunpack.c.l.b16 %v284
        %v306 = vunpack.c.l.b16 %v285
        %v307 = vpack.c.b16 %v300, %v299
        %v308 = vpack.c.b16 %v302, %v301
        %v309 = vpack.c.b16 %v304, %v303
        %v310 = vpack.c.b16 %v306, %v305
        %vm315 = vcmask 523264
        %v317 = vsel %vm315, %v275, 0
        %v320 = vsel %vm315, %v276, 0
        %322 = vmatprep.subr.bf16.mxu0 0
        %323 = vmatpush1.bf16.msra.mxu0 %v307
        %324 = vmatprep.subr.bf16.mxu0 0
        %325 = vmatpush1.bf16.msra.mxu0 %v308
        %326 = vmatprep.subr.bf16.mxu0 0
        %327 = vmatpush1.bf16.msra.mxu0 %v309
        %328 = vmatprep.subr.bf16.mxu0 0
        %329 = vmatpush1.bf16.msra.mxu0 %v310
        %330 = vmatprep.subr.bf16.mxu0 0
        %331 = vmatpush1.bf16.msra.mxu0 0
        %332 = vmatprep.subr.bf16.mxu0 0
        %333 = vmatpush1.bf16.msra.mxu0 0
        %334 = vmatprep.subr.bf16.mxu0 0
        %335 = vmatpush1.bf16.msra.mxu0 0
        %336 = vmatprep.subr.bf16.mxu0 0
        %337 = vmatpush1.bf16.msra.mxu0 0
        %338 = vmatprep.subr.bf16.mxu0 0
        %339 = vmatpush1.bf16.msra.mxu0 0
        %340 = vmatprep.subr.bf16.mxu0 0
        %341 = vmatpush1.bf16.msra.mxu0 0
        %342 = vmatprep.subr.bf16.mxu0 0
        %343 = vmatpush1.bf16.msra.mxu0 0
        %344 = vmatprep.subr.bf16.mxu0 0
        %345 = vmatpush1.bf16.msra.mxu0 0
        %346 = vmatprep.subr.bf16.mxu0 0
        %347 = vmatpush1.bf16.msra.mxu0 0
        %348 = vmatprep.subr.bf16.mxu0 0
        %349 = vmatpush1.bf16.msra.mxu0 0
        %350 = vmatprep.subr.bf16.mxu0 0
        %351 = vmatpush1.bf16.msra.mxu0 0
        %352 = vmatprep.subr.bf16.mxu0 0
        %353 = vmatpush1.bf16.msra.mxu0 0
        %354 = vmatprep.mubr.bf16.mxu0 0
        %355 = vmatmul.mubr.bf16.gmra.mrb[0].mxu0 %v317
        %v356 = vpop.f32.mrb[0].mxu0
        %v357 = vadd.f32 %v290, %v356
        %v358 = vpop.f32.mrb[0].mxu0
        %v359 = vpop.f32.mrb[0].mxu0
        %v360 = vadd.f32 %v290, %v359
        %v361 = vpop.f32.mrb[0].mxu0
        %362 = vmatprep.mubr.bf16.mxu0 0
        %363 = vmatmul.mubr.bf16.gmra.mrb[0].mxu0 %v320
        %v364 = vpop.f32.mrb[0].mxu0
        %v365 = vadd.f32 %v290, %v364
        %v366 = vpop.f32.mrb[0].mxu0
        %v367 = vpop.f32.mrb[0].mxu0
        %v368 = vadd.f32 %v290, %v367
        %v369 = vpop.f32.mrb[0].mxu0
        %370 = vdwg.mxu0
        %v371 = vmax.f32 %v357, 0.0
        %v372 = vmax.f32 %v360, 0.0
        %v373 = vmax.f32 %v365, 0.0
        %v374 = vmax.f32 %v368, 0.0
        %v375 = vpack.c.bf16 %v372, %v371
        %v376 = vpack.c.bf16 %v374, %v373
        %s377 = scalar_lea.vmem [#allocation2], 64
        %v378 = vld [vmem:[%s377] sm:$0xf]
        %v379 = vld [vmem:[%s377 + $0x4] sm:$0xf]
        %v380 = vld [vmem:[%s377 + $0x8] sm:$0xf]
        %v381 = vld [vmem:[%s377 + $0xc] sm:$0xf]
        %v382 = vld [vmem:[%s377 + $0x10] sm:$0xf]
        %v383 = vld [vmem:[%s377 + $0x14] sm:$0xf]
        %v384 = vld [vmem:[%s377 + $0x18] sm:$0xf]
        %v385 = vld [vmem:[%s377 + $0x1c] sm:$0xf]
        %v386 = vld [vmem:[%s2 + $0x2] sm:$0x1]
        %v387 = vlaneseq
        %v388 = vshrl.u32 %v387, 7
        %v389 = vsub.s32 0, %v388
        %v390 = vrot.slane %v386, %v389
        %v399 = vunpack.c.l.b16 %v378
        %v400 = vunpack.c.l.b16 %v379
        %v401 = vunpack.c.l.b16 %v380
        %v402 = vunpack.c.l.b16 %v381
        %v403 = vunpack.c.l.b16 %v382
        %v404 = vunpack.c.l.b16 %v383
        %v405 = vunpack.c.l.b16 %v384
        %v406 = vunpack.c.l.b16 %v385
        %v407 = vpack.c.b16 %v400, %v399
        %v408 = vpack.c.b16 %v402, %v401
        %v409 = vpack.c.b16 %v404, %v403
        %v410 = vpack.c.b16 %v406, %v405
        %v416 = vsel %vm315, %v375, 0
        %v419 = vsel %vm315, %v376, 0
        %421 = vmatprep.subr.bf16.mxu0 0
        %422 = vmatpush1.bf16.msra.mxu0 %v407
        %423 = vmatprep.subr.bf16.mxu0 0
        %424 = vmatpush1.bf16.msra.mxu0 %v408
        %425 = vmatprep.subr.bf16.mxu0 0
        %426 = vmatpush1.bf16.msra.mxu0 %v409
        %427 = vmatprep.subr.bf16.mxu0 0
        %428 = vmatpush1.bf16.msra.mxu0 %v410
        %429 = vmatprep.subr.bf16.mxu0 0
        %430 = vmatpush1.bf16.msra.mxu0 0
        %431 = vmatprep.subr.bf16.mxu0 0
        %432 = vmatpush1.bf16.msra.mxu0 0
        %433 = vmatprep.subr.bf16.mxu0 0
        %434 = vmatpush1.bf16.msra.mxu0 0
        %435 = vmatprep.subr.bf16.mxu0 0
        %436 = vmatpush1.bf16.msra.mxu0 0
        %437 = vmatprep.subr.bf16.mxu0 0
        %438 = vmatpush1.bf16.msra.mxu0 0
        %439 = vmatprep.subr.bf16.mxu0 0
        %440 = vmatpush1.bf16.msra.mxu0 0
        %441 = vmatprep.subr.bf16.mxu0 0
        %442 = vmatpush1.bf16.msra.mxu0 0
        %443 = vmatprep.subr.bf16.mxu0 0
        %444 = vmatpush1.bf16.msra.mxu0 0
        %445 = vmatprep.subr.bf16.mxu0 0
        %446 = vmatpush1.bf16.msra.mxu0 0
        %447 = vmatprep.subr.bf16.mxu0 0
        %448 = vmatpush1.bf16.msra.mxu0 0
        %449 = vmatprep.subr.bf16.mxu0 0
        %450 = vmatpush1.bf16.msra.mxu0 0
        %451 = vmatprep.subr.bf16.mxu0 0
        %452 = vmatpush1.bf16.msra.mxu0 0
        %453 = vmatprep.mubr.bf16.mxu0 0
        %454 = vmatmul.mubr.bf16.gmra.mrb[0].mxu0 %v416
        %v455 = vpop.f32.mrb[0].mxu0
        %v456 = vadd.f32 %v390, %v455
        %v457 = vpop.f32.mrb[0].mxu0
        %v458 = vpop.f32.mrb[0].mxu0
        %v459 = vadd.f32 %v390, %v458
        %v460 = vpop.f32.mrb[0].mxu0
        %461 = vmatprep.mubr.bf16.mxu0 0
        %462 = vmatmul.mubr.bf16.gmra.mrb[0].mxu0 %v419
        %v463 = vpop.f32.mrb[0].mxu0
        %v464 = vadd.f32 %v390, %v463
        %v465 = vpop.f32.mrb[0].mxu0
        %v466 = vpop.f32.mrb[0].mxu0
        %v467 = vadd.f32 %v390, %v466
        %v468 = vpop.f32.mrb[0].mxu0
        %469 = vdwg.mxu0
        %v470 = vmax.f32 %v456, 0.0
        %v471 = vmax.f32 %v459, 0.0
        %v472 = vmax.f32 %v464, 0.0
        %v473 = vmax.f32 %v467, 0.0
        %v474 = vpack.c.bf16 %v471, %v470
        %v475 = vpack.c.bf16 %v473, %v472
        %s476 = scalar_lea.vmem [#allocation2], 96
        %v477 = vld [vmem:[%s476] sm:$0xf]
        %v478 = vld [vmem:[%s476 + $0x4] sm:$0xf]
        %v479 = vld [vmem:[%s476 + $0x8] sm:$0xf]
        %v480 = vld [vmem:[%s476 + $0xc] sm:$0xf]
        %v481 = vld [vmem:[%s476 + $0x10] sm:$0xf]
        %v482 = vld [vmem:[%s476 + $0x14] sm:$0xf]
        %v483 = vld [vmem:[%s476 + $0x18] sm:$0xf]
        %v484 = vld [vmem:[%s476 + $0x1c] sm:$0xf]
        %v485 = vld [vmem:[%s2 + $0x3] sm:$0x1]
        %v486 = vlaneseq
        %v487 = vshrl.u32 %v486, 7
        %v488 = vsub.s32 0, %v487
        %v489 = vrot.slane %v485, %v488
        %v498 = vunpack.c.l.b16 %v477
        %v499 = vunpack.c.l.b16 %v478
        %v500 = vunpack.c.l.b16 %v479
        %v501 = vunpack.c.l.b16 %v480
        %v502 = vunpack.c.l.b16 %v481
        %v503 = vunpack.c.l.b16 %v482
        %v504 = vunpack.c.l.b16 %v483
        %v505 = vunpack.c.l.b16 %v484
        %v506 = vpack.c.b16 %v499, %v498
        %v507 = vpack.c.b16 %v501, %v500
        %v508 = vpack.c.b16 %v503, %v502
        %v509 = vpack.c.b16 %v505, %v504
        %v515 = vsel %vm315, %v474, 0
        %v518 = vsel %vm315, %v475, 0
        %520 = vmatprep.subr.bf16.mxu0 0
        %521 = vmatpush1.bf16.msra.mxu0 %v506
        %522 = vmatprep.subr.bf16.mxu0 0
        %523 = vmatpush1.bf16.msra.mxu0 %v507
        %524 = vmatprep.subr.bf16.mxu0 0
        %525 = vmatpush1.bf16.msra.mxu0 %v508
        %526 = vmatprep.subr.bf16.mxu0 0
        %527 = vmatpush1.bf16.msra.mxu0 %v509
        %528 = vmatprep.subr.bf16.mxu0 0
        %529 = vmatpush1.bf16.msra.mxu0 0
        %530 = vmatprep.subr.bf16.mxu0 0
        %531 = vmatpush1.bf16.msra.mxu0 0
        %532 = vmatprep.subr.bf16.mxu0 0
        %533 = vmatpush1.bf16.msra.mxu0 0
        %534 = vmatprep.subr.bf16.mxu0 0
        %535 = vmatpush1.bf16.msra.mxu0 0
        %536 = vmatprep.subr.bf16.mxu0 0
        %537 = vmatpush1.bf16.msra.mxu0 0
        %538 = vmatprep.subr.bf16.mxu0 0
        %539 = vmatpush1.bf16.msra.mxu0 0
        %540 = vmatprep.subr.bf16.mxu0 0
        %541 = vmatpush1.bf16.msra.mxu0 0
        %542 = vmatprep.subr.bf16.mxu0 0
        %543 = vmatpush1.bf16.msra.mxu0 0
        %544 = vmatprep.subr.bf16.mxu0 0
        %545 = vmatpush1.bf16.msra.mxu0 0
        %546 = vmatprep.subr.bf16.mxu0 0
        %547 = vmatpush1.bf16.msra.mxu0 0
        %548 = vmatprep.subr.bf16.mxu0 0
        %549 = vmatpush1.bf16.msra.mxu0 0
        %550 = vmatprep.subr.bf16.mxu0 0
        %551 = vmatpush1.bf16.msra.mxu0 0
        %552 = vmatprep.mubr.bf16.mxu0 0
        %553 = vmatmul.mubr.bf16.gmra.mrb[0].mxu0 %v515
        %v554 = vpop.f32.mrb[0].mxu0
        %v555 = vadd.f32 %v489, %v554
        %v556 = vpop.f32.mrb[0].mxu0
        %v557 = vpop.f32.mrb[0].mxu0
        %v558 = vadd.f32 %v489, %v557
        %v559 = vpop.f32.mrb[0].mxu0
        %560 = vmatprep.mubr.bf16.mxu0 0
        %561 = vmatmul.mubr.bf16.gmra.mrb[0].mxu0 %v518
        %v562 = vpop.f32.mrb[0].mxu0
        %v563 = vadd.f32 %v489, %v562
        %v564 = vpop.f32.mrb[0].mxu0
        %v565 = vpop.f32.mrb[0].mxu0
        %v566 = vadd.f32 %v489, %v565
        %v567 = vpop.f32.mrb[0].mxu0
        %568 = vdwg.mxu0
        %v569 = vmax.f32 %v555, 0.0
        %v570 = vmax.f32 %v558, 0.0
        %v571 = vmax.f32 %v563, 0.0
        %v572 = vmax.f32 %v566, 0.0
        %v573 = vpack.c.bf16 %v570, %v569
        %v574 = vpack.c.bf16 %v572, %v571
        %s575 = scalar_lea.vmem [#allocation2], 128
        %v576 = vld [vmem:[%s575] sm:$0xf]
        %v577 = vld [vmem:[%s575 + $0x4] sm:$0xf]
        %v578 = vld [vmem:[%s575 + $0x8] sm:$0xf]
        %v579 = vld [vmem:[%s575 + $0xc] sm:$0xf]
        %v580 = vld [vmem:[%s575 + $0x10] sm:$0xf]
        %v581 = vld [vmem:[%s575 + $0x14] sm:$0xf]
        %v582 = vld [vmem:[%s575 + $0x18] sm:$0xf]
        %v583 = vld [vmem:[%s575 + $0x1c] sm:$0xf]
        %v584 = vld [vmem:[%s2 + $0x4] sm:$0x1]
        %v585 = vlaneseq
        %v586 = vshrl.u32 %v585, 7
        %v587 = vsub.s32 0, %v586
        %v588 = vrot.slane %v584, %v587
        %v597 = vunpack.c.l.b16 %v576
        %v598 = vunpack.c.l.b16 %v577
        %v599 = vunpack.c.l.b16 %v578
        %v600 = vunpack.c.l.b16 %v579
        %v601 = vunpack.c.l.b16 %v580
        %v602 = vunpack.c.l.b16 %v581
        %v603 = vunpack.c.l.b16 %v582
        %v604 = vunpack.c.l.b16 %v583
        %v605 = vpack.c.b16 %v598, %v597
        %v606 = vpack.c.b16 %v600, %v599
        %v607 = vpack.c.b16 %v602, %v601
        %v608 = vpack.c.b16 %v604, %v603
        %v614 = vsel %vm315, %v573, 0
        %v617 = vsel %vm315, %v574, 0
        %619 = vmatprep.subr.bf16.mxu0 0
        %620 = vmatpush1.bf16.msra.mxu0 %v605
        %621 = vmatprep.subr.bf16.mxu0 0
        %622 = vmatpush1.bf16.msra.mxu0 %v606
        %623 = vmatprep.subr.bf16.mxu0 0
        %624 = vmatpush1.bf16.msra.mxu0 %v607
        %625 = vmatprep.subr.bf16.mxu0 0
        %626 = vmatpush1.bf16.msra.mxu0 %v608
        %627 = vmatprep.subr.bf16.mxu0 0
        %628 = vmatpush1.bf16.msra.mxu0 0
        %629 = vmatprep.subr.bf16.mxu0 0
        %630 = vmatpush1.bf16.msra.mxu0 0
        %631 = vmatprep.subr.bf16.mxu0 0
        %632 = vmatpush1.bf16.msra.mxu0 0
        %633 = vmatprep.subr.bf16.mxu0 0
        %634 = vmatpush1.bf16.msra.mxu0 0
        %635 = vmatprep.subr.bf16.mxu0 0
        %636 = vmatpush1.bf16.msra.mxu0 0
        %637 = vmatprep.subr.bf16.mxu0 0
        %638 = vmatpush1.bf16.msra.mxu0 0
        %639 = vmatprep.subr.bf16.mxu0 0
        %640 = vmatpush1.bf16.msra.mxu0 0
        %641 = vmatprep.subr.bf16.mxu0 0
        %642 = vmatpush1.bf16.msra.mxu0 0
        %643 = vmatprep.subr.bf16.mxu0 0
        %644 = vmatpush1.bf16.msra.mxu0 0
        %645 = vmatprep.subr.bf16.mxu0 0
        %646 = vmatpush1.bf16.msra.mxu0 0
        %647 = vmatprep.subr.bf16.mxu0 0
        %648 = vmatpush1.bf16.msra.mxu0 0
        %649 = vmatprep.subr.bf16.mxu0 0
        %650 = vmatpush1.bf16.msra.mxu0 0
        %651 = vmatprep.mubr.bf16.mxu0 0
        %652 = vmatmul.mubr.bf16.gmra.mrb[0].mxu0 %v614
        %v653 = vpop.f32.mrb[0].mxu0
        %v654 = vadd.f32 %v588, %v653
        %v655 = vpop.f32.mrb[0].mxu0
        %v656 = vpop.f32.mrb[0].mxu0
        %v657 = vadd.f32 %v588, %v656
        %v658 = vpop.f32.mrb[0].mxu0
        %659 = vmatprep.mubr.bf16.mxu0 0
        %660 = vmatmul.mubr.bf16.gmra.mrb[0].mxu0 %v617
        %v661 = vpop.f32.mrb[0].mxu0
        %v662 = vadd.f32 %v588, %v661
        %v663 = vpop.f32.mrb[0].mxu0
        %v664 = vpop.f32.mrb[0].mxu0
        %v665 = vadd.f32 %v588, %v664
        %v666 = vpop.f32.mrb[0].mxu0
        %667 = vdwg.mxu0
        %668 = vst.msk [vmem:[%s179] sm:$0xff] %vm315, %v654
        %669 = vst.msk [vmem:[%s179 + $0x8] sm:$0xff] %vm315, %v657
        %670 = vst.msk [vmem:[%s179 + $0x10] sm:$0xff] %vm315, %v662
        %671 = vst.msk [vmem:[%s179 + $0x18] sm:$0xff] %vm315, %v665
        %s672 = sand.u32 %s94, 1
        %s673 = scalar_lea.sflag [#allocation4], %s672
        %s674 = sand.u32 %s94, 1
        %s675 = smul.addr %s674, 32
        %s676 = scalar_lea.vmem [#allocation5], %s675
        // Predicated region
        $region37: #{tpu_custom_call.1} parent=31 // pred_check
          %p677 = pneg %p104
        $region38: #{tpu_custom_call.1} parent=31 // pred_check_branch
          %679 = sbr.rel (%p677) target = $region40
        $region39: #{tpu_custom_call.1} parent=31 // pred_region
          %s680 = smul.u32 4, %s18
          %s682 = ssub.s32 512, 512
          %683 = vsyncadd %s673, %s682
          %s684 = smul.addr %s680, 128
          %s685 = scalar_lea.hbm %s3, %s684
          %s686 = sshll.u32 %s676, 4
          %s687 = int_to_ptr.vmem [resolvable:$true] %s686
          %692 = dma.vmem_to_hbm [thread:$0]  %s687, 512, %s685, %s673, 128, 128, 8
        $region40: #{tpu_custom_call.1} parent=31 // pred_fallthru
          _
      $region32: #{tpu_custom_call.1} parent=5 // pred_fallthru
        _
      %p693 = scmp.le.s32.totalorder 2, %s13
      // Predicated region
      $region41: #{tpu_custom_call.1} parent=5 // pred_check
        %p694 = pneg %p693
      $region42: #{tpu_custom_call.1} parent=5 // pred_check_branch
        %696 = sbr.rel (%p694) target = $region44
      $region43: #{tpu_custom_call.1} parent=5 // pred_region
        %s697 = ssub.s32 %s13, 2
        // Predicated region
        $region45: #{tpu_custom_call.1} parent=43 // pred_check
          %p698 = pneg %p110
        $region46: #{tpu_custom_call.1} parent=43 // pred_check_branch
          %700 = sbr.rel (%p698) target = $region48
        $region47: #{tpu_custom_call.1} parent=43 // pred_region
          %s701 = sand.u32 %s95, 1
          %s702 = scalar_lea.sflag [#allocation4], %s701
          %s703 = sand.u32 %s95, 1
          %s704 = smul.addr %s703, 32
          %s705 = scalar_lea.vmem [#allocation5], %s704
          %706 = dma.done %s702, 512
        $region48: #{tpu_custom_call.1} parent=43 // pred_fallthru
          _
      $region44: #{tpu_custom_call.1} parent=5 // pred_fallthru
        _
    $region6: #{tpu_custom_call.1} parent=1 // loop_footer
      %s17 = sadd.s32 1, %s13
    $region7: #{tpu_custom_call.1} parent=1 // loop_footer_branch
      %12 = sbr.rel target = $region3
    $region8: #{tpu_custom_call.1} parent=1 // loop_exit
      _
    %707 = vsyncpa [#allocation3], 1
    %s708 = scalar_lea.sflag [#allocation3], 1
    %709 = vsyncpa %s708, 1
    %710 = vsyncpa [#allocation4], 1
    %s711 = scalar_lea.sflag [#allocation4], 1
    %712 = vsyncpa %s711, 1

</llo_original>
